<compile_context>
chip_gen: v7x
topology: tpu7x:2x2x1
jax: 0.10.0
libtpu: 0.0.40
codegen_flags: <defaults>
</compile_context>

<pallas_src>
import functools

import jax
import jax.numpy as jnp
from jax.experimental import pallas as pl
from jax.experimental.pallas import tpu as pltpu


def _mlp_kernel(x_ref, w1_ref, b1_ref, w2_ref, b2_ref, w3_ref, b3_ref, o_ref):
    # x_ref: (block_n, latent_dim) tile in x's NATIVE layout (no wrapper-side
    # HBM transpose).  Transpose the tile on the XLU so the batch dimension
    # lands on lanes: lane-dense output and MXU-friendly layer shapes.
    xt = jnp.transpose(x_ref[...]).astype(jnp.bfloat16)          # (d, block_n)

    # Layer 1: (h, d) @ (d, block_n) on the MXU, f32 accumulation.
    h1 = jnp.dot(w1_ref[...], xt,
                 preferred_element_type=jnp.float32) + b1_ref[...]
    h1 = jnp.maximum(h1, 0.0)

    # Layer 2: (h, h) @ (h, block_n).
    h2 = jnp.dot(w2_ref[...], h1.astype(jnp.bfloat16),
                 preferred_element_type=jnp.float32) + b2_ref[...]
    h2 = jnp.maximum(h2, 0.0)

    # Layer 3: single output row.  VPU multiply + sublane (XLU) reduce; the
    # (1, block_n) result is already lane-dense.  b3 is a scalar from SMEM.
    # (On v5e this row could instead ride the otherwise-idle MXU; on v6e/v7x
    # the VPU/XLU path is fine.)
    h3 = jnp.sum(h2 * w3_ref[...], axis=0, keepdims=True) + b3_ref[0]
    o_ref[...] = jnp.tanh(h3).astype(o_ref.dtype)


def _num_tensorcores_per_chip():
    """v7x has 2 TensorCores per chip; v5e/v6e have 1.  Fall back to 1."""
    try:
        kind = jax.devices()[0].device_kind.lower()
    except Exception:  # pragma: no cover - device query should not fail
        return 1
    return 2 if "v7" in kind else 1


def _round_up(v, m):
    return ((v + m - 1) // m) * m


_MAX_BLOCK_N = 8192  # lanes per tile; x tile = block_n*latent_dim*4 B (1 MiB @ 8192x32)


def _pick_block_n(n):
    # One big tile per TensorCore: only v7x (2 TCs) benefits from splitting the
    # batch; v5e/v6e take the largest tile covering N, up to the cap.
    ntc = _num_tensorcores_per_chip()
    per_core = -(-n // ntc)
    return max(128, min(_MAX_BLOCK_N, _round_up(per_core, 128)))


@functools.partial(jax.jit, static_argnames=("block_n",))
def _forward_impl(x, params, block_n):
    w1, b1, w2, b2, w3, b3 = params
    n, d = x.shape
    h = w1.shape[0]

    num_blocks = pl.cdiv(n, block_n)
    n_pad = num_blocks * block_n  # output is tiny; keep its lane dim block-aligned

    # Resident weights: cast once outside the kernel instead of every grid step.
    w1b = w1.astype(jnp.bfloat16)
    w2b = w2.astype(jnp.bfloat16)

    full = lambda shape: pl.BlockSpec(shape, lambda i: (0, 0))

    out = pl.pallas_call(
        _mlp_kernel,
        out_shape=jax.ShapeDtypeStruct((1, n_pad), jnp.float32),
        grid_spec=pltpu.PrefetchScalarGridSpec(
            num_scalar_prefetch=0,
            grid=(num_blocks,),
            in_specs=[
                pl.BlockSpec((block_n, d), lambda i: (i, 0)),       # x, native layout
                full((h, d)),                                       # w1 bf16 (out,in)
                full((h, 1)),                                       # b1 column
                full((h, h)),                                       # w2 bf16 (out,in)
                full((h, 1)),                                       # b2 column
                full((h, 1)),                                       # w3 column (f32)
                pl.BlockSpec(memory_space=pltpu.MemorySpace.SMEM),  # b3 scalar
            ],
            out_specs=pl.BlockSpec((1, block_n), lambda i: (0, i)),
        ),
        compiler_params=pltpu.CompilerParams(
            dimension_semantics=("parallel",),
            vmem_limit_bytes=32 * 1024 * 1024,
        ),
    )(x, w1b, b1, w2b, b2, w3, b3)

    # Trailing partial-block lanes hold don't-care values; slice them off.
    return out[0, :n].reshape(n, 1)


def idbf_barrier_forward(x, params, block_n=None):
    """x: (N, latent_dim) float32. Returns (N, 1) float32."""
    n = x.shape[0]
    if block_n is None:
        block_n = _pick_block_n(n)
    else:
        block_n = max(128, _round_up(block_n, 128))
    return _forward_impl(x, params, block_n)


def init_params(key, latent_dim, h_dim):
    """torch.nn.Linear-style init (uniform(-1/sqrt(fan_in), 1/sqrt(fan_in))),
    stored in kernel layout: weights (out_features, in_features) [PyTorch
    layout], biases as (out_features, 1) columns; the last layer's weight is
    kept as an (h, 1) column and its bias as a flat (1,) scalar for SMEM."""
    dims = [latent_dim, h_dim, h_dim, 1]
    params = []
    for i in range(3):
        fan_in, fan_out = dims[i], dims[i + 1]
        key, kw, kb = jax.random.split(key, 3)
        bound = 1.0 / jnp.sqrt(fan_in)
        w = jax.random.uniform(kw, (fan_out, fan_in), jnp.float32, -bound, bound)
        b = jax.random.uniform(kb, (fan_out, 1), jnp.float32, -bound, bound)
        params += [w, b]
    w1, b1, w2, b2, w3, b3 = params
    return (w1, b1, w2, b2, w3.T, b3.reshape(1))


def reference_forward(x, params):
    """Pure-JAX f32 reference matching the PyTorch module."""
    w1, b1, w2, b2, w3c, b3 = params
    h1 = jnp.maximum(x @ w1.T + b1[:, 0], 0.0)
    h2 = jnp.maximum(h1 @ w2.T + b2[:, 0], 0.0)
    return jnp.tanh(h2 @ w3c + b3)


# TODO(synk): loss_function (label filtering, autograd-based ascent term, ODE
# coupling) is training-time logic outside forward() and is not implemented.

if __name__ == "__main__":
    latent_dim = 32
    h_dim = 64
    batch = 300  # not a multiple of 128: exercises the unpadded partial block

    key = jax.random.PRNGKey(0)
    key, kx = jax.random.split(key)
    x = jax.random.normal(kx, (batch, latent_dim), jnp.float32)
    params = init_params(key, latent_dim, h_dim)

    out = idbf_barrier_forward(x, params)
    out = jax.block_until_ready(out)

    ref = reference_forward(x, params)
    assert out.shape == (batch, 1), out.shape
    err = jnp.max(jnp.abs(out - ref))
    # bf16 MXU inputs with f32 accumulation -> relaxed tolerance vs f32 reference.
    assert err < 2e-2, f"max err {err}"
    print("KERNEL_OK")
</pallas_src>

<mosaic_0001>
module attributes {stable_mosaic.version = 11 : i64} {
  func.func @_mlp_kernel(%arg0: i32, %arg1: memref<384x32xf32, #tpu.memory_space<vmem>>, %arg2: memref<64x32xbf16, #tpu.memory_space<vmem>>, %arg3: memref<64x1xf32, #tpu.memory_space<vmem>>, %arg4: memref<64x64xbf16, #tpu.memory_space<vmem>>, %arg5: memref<64x1xf32, #tpu.memory_space<vmem>>, %arg6: memref<64x1xf32, #tpu.memory_space<vmem>>, %arg7: memref<1xf32, #tpu.memory_space<smem>>, %arg8: memref<1x384xf32, #tpu.memory_space<vmem>>) attributes {dimension_semantics = [#tpu.dimension_semantics<parallel>], iteration_bounds = array<i64: 1>, scalar_prefetch = 0 : i64, scratch_operands = 0 : i64, tpu.core_type = #tpu.core_type<tc>, window_params = [{transform_indices = @transform_0, window_bounds = array<i64: 384, 32>}, {pipeline_mode = #tpu.pipeline_mode<synchronous>, transform_indices = @transform_1, window_bounds = array<i64: 64, 32>}, {pipeline_mode = #tpu.pipeline_mode<synchronous>, transform_indices = @transform_2, window_bounds = array<i64: 64, 1>}, {pipeline_mode = #tpu.pipeline_mode<synchronous>, transform_indices = @transform_3, window_bounds = array<i64: 64, 64>}, {pipeline_mode = #tpu.pipeline_mode<synchronous>, transform_indices = @transform_4, window_bounds = array<i64: 64, 1>}, {pipeline_mode = #tpu.pipeline_mode<synchronous>, transform_indices = @transform_5, window_bounds = array<i64: 64, 1>}, {transform_indices = @transform_6, window_bounds = array<i64: 1>}, {transform_indices = @transform_7, window_bounds = array<i64: 1, 384>}]} {
    %c0 = arith.constant 0 : index
    %c0_0 = arith.constant 0 : index
    %0 = vector.load %arg1[%c0, %c0_0] : memref<384x32xf32, #tpu.memory_space<vmem>>, vector<384x32xf32>
    %1 = tpu.transpose %0, [1, 0] : vector<384x32xf32> -> vector<32x384xf32>
    %2 = arith.truncf %1 : vector<32x384xf32> to vector<32x384xbf16>
    %c0_1 = arith.constant 0 : index
    %c0_2 = arith.constant 0 : index
    %3 = vector.load %arg2[%c0_1, %c0_2] : memref<64x32xbf16, #tpu.memory_space<vmem>>, vector<64x32xbf16>
    %cst = arith.constant dense<0.000000e+00> : vector<64x384xf32>
    %4 = tpu.matmul %3, %2, %cst {dimension_numbers = #tpu.dot_dimension_numbers<[1], [0], [0], [1], [0, 0, 1, 1], [], []>} : vector<64x32xbf16>, vector<32x384xbf16>, vector<64x384xf32> -> vector<64x384xf32>
    %c0_3 = arith.constant 0 : index
    %c0_4 = arith.constant 0 : index
    %5 = vector.load %arg3[%c0_3, %c0_4] : memref<64x1xf32, #tpu.memory_space<vmem>>, vector<64x1xf32>
    %6 = vector.broadcast %5 : vector<64x1xf32> to vector<64x384xf32>
    %7 = arith.addf %4, %6 : vector<64x384xf32>
    %cst_5 = arith.constant 0.000000e+00 : f32
    %8 = vector.broadcast %cst_5 : f32 to vector<64x384xf32>
    %9 = arith.maximumf %7, %8 : vector<64x384xf32>
    %c0_6 = arith.constant 0 : index
    %c0_7 = arith.constant 0 : index
    %10 = vector.load %arg4[%c0_6, %c0_7] : memref<64x64xbf16, #tpu.memory_space<vmem>>, vector<64x64xbf16>
    %11 = arith.truncf %9 : vector<64x384xf32> to vector<64x384xbf16>
    %cst_8 = arith.constant dense<0.000000e+00> : vector<64x384xf32>
    %12 = tpu.matmul %10, %11, %cst_8 {dimension_numbers = #tpu.dot_dimension_numbers<[1], [0], [0], [1], [0, 0, 1, 1], [], []>} : vector<64x64xbf16>, vector<64x384xbf16>, vector<64x384xf32> -> vector<64x384xf32>
    %c0_9 = arith.constant 0 : index
    %c0_10 = arith.constant 0 : index
    %13 = vector.load %arg5[%c0_9, %c0_10] : memref<64x1xf32, #tpu.memory_space<vmem>>, vector<64x1xf32>
    %14 = vector.broadcast %13 : vector<64x1xf32> to vector<64x384xf32>
    %15 = arith.addf %12, %14 : vector<64x384xf32>
    %cst_11 = arith.constant 0.000000e+00 : f32
    %16 = vector.broadcast %cst_11 : f32 to vector<64x384xf32>
    %17 = arith.maximumf %15, %16 : vector<64x384xf32>
    %c0_12 = arith.constant 0 : index
    %c0_13 = arith.constant 0 : index
    %18 = vector.load %arg6[%c0_12, %c0_13] : memref<64x1xf32, #tpu.memory_space<vmem>>, vector<64x1xf32>
    %19 = vector.broadcast %18 : vector<64x1xf32> to vector<64x384xf32>
    %20 = arith.mulf %17, %19 : vector<64x384xf32>
    %cst_14 = arith.constant dense<0.000000e+00> : vector<384xf32>
    %21 = vector.multi_reduction <add>, %20, %cst_14 [0] : vector<64x384xf32> to vector<384xf32>
    %22 = vector.shape_cast %21 : vector<384xf32> to vector<1x384xf32>
    %c0_15 = arith.constant 0 : index
    %23 = memref.load %arg7[%c0_15] : memref<1xf32, #tpu.memory_space<smem>>
    %24 = vector.broadcast %23 : f32 to vector<1x384xf32>
    %25 = arith.addf %22, %24 : vector<1x384xf32>
    %26 = math.tanh %25 : vector<1x384xf32>
    %c0_16 = arith.constant 0 : index
    %c0_17 = arith.constant 0 : index
    %27 = vector.load %arg8[%c0_16, %c0_17] : memref<1x384xf32, #tpu.memory_space<vmem>>, vector<1x384xf32>
    tpu.vector_store %arg8[%c0_16, %c0_17], %26 {strides = array<i32>} : memref<1x384xf32, #tpu.memory_space<vmem>>, vector<1x384xf32>,
    return
  }
  func.func @transform_0(%arg0: i32) -> (i32, i32) {
    %c0_i32 = arith.constant 0 : i32
    %c0_i32_0 = arith.constant 0 : i32
    return %arg0, %c0_i32 : i32, i32
  }
  func.func @transform_1(%arg0: i32) -> (i32, i32) {
    %c0_i32 = arith.constant 0 : i32
    %c0_i32_0 = arith.constant 0 : i32
    %c0_i32_1 = arith.constant 0 : i32
    return %c0_i32, %c0_i32_0 : i32, i32
  }
  func.func @transform_2(%arg0: i32) -> (i32, i32) {
    %c0_i32 = arith.constant 0 : i32
    %c0_i32_0 = arith.constant 0 : i32
    %c0_i32_1 = arith.constant 0 : i32
    return %c0_i32, %c0_i32_0 : i32, i32
  }
  func.func @transform_3(%arg0: i32) -> (i32, i32) {
    %c0_i32 = arith.constant 0 : i32
    %c0_i32_0 = arith.constant 0 : i32
    %c0_i32_1 = arith.constant 0 : i32
    return %c0_i32, %c0_i32_0 : i32, i32
  }
  func.func @transform_4(%arg0: i32) -> (i32, i32) {
    %c0_i32 = arith.constant 0 : i32
    %c0_i32_0 = arith.constant 0 : i32
    %c0_i32_1 = arith.constant 0 : i32
    return %c0_i32, %c0_i32_0 : i32, i32
  }
  func.func @transform_5(%arg0: i32) -> (i32, i32) {
    %c0_i32 = arith.constant 0 : i32
    %c0_i32_0 = arith.constant 0 : i32
    %c0_i32_1 = arith.constant 0 : i32
    return %c0_i32, %c0_i32_0 : i32, i32
  }
  func.func @transform_6(%arg0: i32) -> i32 {
    %c0_i32 = arith.constant 0 : i32
    %c0_i32_0 = arith.constant 0 : i32
    return %c0_i32 : i32
  }
  func.func @transform_7(%arg0: i32) -> (i32, i32) {
    %c0_i32 = arith.constant 0 : i32
    %c0_i32_0 = arith.constant 0 : i32
    return %c0_i32, %arg0 : i32, i32
  }
}

</mosaic_0001>

<llo_original>
// kernel: _forward_impl.1
$region0: #{_forward_impl.1}
  #allocation0 [shape = 'u32[]', space=smem, size = 0x4, offset = 0x4, fixed_abs, tag = 'smem constant byte address 0x4 - core index']
  #allocation1 [shape = 'u32[144,128]{1,0:T(1,128)}', space=vmem, size = 0x12000, scoped, tag = 'internal scratch']
  #allocation2 [shape = 'f32[1]{0:T(128)S(6)}', space=smem, size = 0x200, scoped, tag = 'scoped memory for _forward_impl.1']
  %s0 = inlined_call_operand.vmem [shape: f32[300,32], index: 0, kind: input, shape index: {}]
  %s1 = inlined_call_operand.vmem [shape: bf16[64,32], index: 1, kind: input, shape index: {}]
  %s2 = inlined_call_operand.vmem [shape: f32[64,1], index: 2, kind: input, shape index: {}]
  %s3 = inlined_call_operand.vmem [shape: bf16[64,64], index: 3, kind: input, shape index: {}]
  %s4 = inlined_call_operand.vmem [shape: f32[64,1], index: 4, kind: input, shape index: {}]
  %s5 = inlined_call_operand.vmem [shape: f32[64,1], index: 5, kind: input, shape index: {}]
  %s6 = inlined_call_operand.<no memory space> [shape: f32[1], index: 6, kind: input, shape index: {}]
  %s7 = inlined_call_operand.vmem [shape: f32[1,384], index: 7, kind: output, shape index: {}]
  %s8 = sld [smem:[#allocation0]]
  $region38: #{_forward_impl.1} parent=0
    _
  %s10 = ssub.s32 1, %s8
  %s11 = scalar_select 0, %s10, %s8
  %12 = sst [smem:[#allocation2]] %s6
  // Predicated region
  $region2: #{_forward_impl.1} parent=0 // pred_check
    _
  $region3: #{_forward_impl.1} parent=0 // pred_check_branch
    %14 = sbr.rel (0) target = $region5
  $region4: #{_forward_impl.1} parent=0 // pred_region
    _
  $region5: #{_forward_impl.1} parent=0 // pred_fallthru
    _
  // Predicated region
  $region6: #{_forward_impl.1} parent=0 // pred_check
    _
  $region7: #{_forward_impl.1} parent=0 // pred_check_branch
    %16 = sbr.rel (0) target = $region9
  $region8: #{_forward_impl.1} parent=0 // pred_region
    _
  $region9: #{_forward_impl.1} parent=0 // pred_fallthru
    _
  // Predicated region
  $region10: #{_forward_impl.1} parent=0 // pred_check
    _
  $region11: #{_forward_impl.1} parent=0 // pred_check_branch
    %18 = sbr.rel (0) target = $region13
  $region12: #{_forward_impl.1} parent=0 // pred_region
    _
  $region13: #{_forward_impl.1} parent=0 // pred_fallthru
    _
  // Predicated region
  $region14: #{_forward_impl.1} parent=0 // pred_check
    _
  $region15: #{_forward_impl.1} parent=0 // pred_check_branch
    %20 = sbr.rel (0) target = $region17
  $region16: #{_forward_impl.1} parent=0 // pred_region
    _
  $region17: #{_forward_impl.1} parent=0 // pred_fallthru
    _
  // Predicated region
  $region18: #{_forward_impl.1} parent=0 // pred_check
    _
  $region19: #{_forward_impl.1} parent=0 // pred_check_branch
    %22 = sbr.rel (0) target = $region21
  $region20: #{_forward_impl.1} parent=0 // pred_region
    _
  $region21: #{_forward_impl.1} parent=0 // pred_fallthru
    _
  // Predicated region
  $region22: #{_forward_impl.1} parent=0 // pred_check
    _
  $region23: #{_forward_impl.1} parent=0 // pred_check_branch
    %24 = sbr.rel (0) target = $region25
  $region24: #{_forward_impl.1} parent=0 // pred_region
    _
  $region25: #{_forward_impl.1} parent=0 // pred_fallthru
    _
  // Predicated region
  $region26: #{_forward_impl.1} parent=0 // pred_check
    _
  $region27: #{_forward_impl.1} parent=0 // pred_check_branch
    %26 = sbr.rel (0) target = $region29
  $region28: #{_forward_impl.1} parent=0 // pred_region
    _
  $region29: #{_forward_impl.1} parent=0 // pred_fallthru
    _
  %v28 = vld [vmem:[%s0] sm:$0xff]
  %v29 = vld [vmem:[%s0 + $0x8] sm:$0xff]
  %v30 = vld [vmem:[%s0 + $0x10] sm:$0xff]
  %v31 = vld [vmem:[%s0 + $0x18] sm:$0xff]
  %v32 = vld [vmem:[%s0 + $0x20] sm:$0xff]
  %v33 = vld [vmem:[%s0 + $0x28] sm:$0xff]
  %v34 = vld [vmem:[%s0 + $0x30] sm:$0xff]
  %v35 = vld [vmem:[%s0 + $0x38] sm:$0xff]
  %v36 = vld [vmem:[%s0 + $0x40] sm:$0xff]
  %v37 = vld [vmem:[%s0 + $0x48] sm:$0xff]
  %v38 = vld [vmem:[%s0 + $0x50] sm:$0xff]
  %v39 = vld [vmem:[%s0 + $0x58] sm:$0xff]
  %v40 = vld [vmem:[%s0 + $0x60] sm:$0xff]
  %v41 = vld [vmem:[%s0 + $0x68] sm:$0xff]
  %v42 = vld [vmem:[%s0 + $0x70] sm:$0xff]
  %v43 = vld [vmem:[%s0 + $0x78] sm:$0xff]
  %v44 = vld [vmem:[%s0 + $0x80] sm:$0xff]
  %v45 = vld [vmem:[%s0 + $0x88] sm:$0xff]
  %v46 = vld [vmem:[%s0 + $0x90] sm:$0xff]
  %v47 = vld [vmem:[%s0 + $0x98] sm:$0xff]
  %v48 = vld [vmem:[%s0 + $0xa0] sm:$0xff]
  %v49 = vld [vmem:[%s0 + $0xa8] sm:$0xff]
  %v50 = vld [vmem:[%s0 + $0xb0] sm:$0xff]
  %v51 = vld [vmem:[%s0 + $0xb8] sm:$0xff]
  %v52 = vld [vmem:[%s0 + $0xc0] sm:$0xff]
  %v53 = vld [vmem:[%s0 + $0xc8] sm:$0xff]
  %v54 = vld [vmem:[%s0 + $0xd0] sm:$0xff]
  %v55 = vld [vmem:[%s0 + $0xd8] sm:$0xff]
  %v56 = vld [vmem:[%s0 + $0xe0] sm:$0xff]
  %v57 = vld [vmem:[%s0 + $0xe8] sm:$0xff]
  %v58 = vld [vmem:[%s0 + $0xf0] sm:$0xff]
  %v59 = vld [vmem:[%s0 + $0xf8] sm:$0xff]
  %v60 = vld [vmem:[%s0 + $0x100] sm:$0xff]
  %v61 = vld [vmem:[%s0 + $0x108] sm:$0xff]
  %v62 = vld [vmem:[%s0 + $0x110] sm:$0xff]
  %v63 = vld [vmem:[%s0 + $0x118] sm:$0xff]
  %v64 = vld [vmem:[%s0 + $0x120] sm:$0xff]
  %v65 = vld [vmem:[%s0 + $0x128] sm:$0xff]
  %v66 = vld [vmem:[%s0 + $0x130] sm:$0xff]
  %v67 = vld [vmem:[%s0 + $0x138] sm:$0xff]
  %v68 = vld [vmem:[%s0 + $0x140] sm:$0xff]
  %v69 = vld [vmem:[%s0 + $0x148] sm:$0xff]
  %v70 = vld [vmem:[%s0 + $0x150] sm:$0xff]
  %v71 = vld [vmem:[%s0 + $0x158] sm:$0xff]
  %v72 = vld [vmem:[%s0 + $0x160] sm:$0xff]
  %v73 = vld [vmem:[%s0 + $0x168] sm:$0xff]
  %v74 = vld [vmem:[%s0 + $0x170] sm:$0xff]
  %v75 = vld [vmem:[%s0 + $0x178] sm:$0xff]
  %76 = vxpose.xlu0.b32.start [1/16] %v28, 128
  %77 = vxpose.xlu0.b32.cont [2/16] %v29, 128
  %78 = vxpose.xlu0.b32.cont [3/16] %v30, 128
  %79 = vxpose.xlu0.b32.cont [4/16] %v31, 128
  %80 = vxpose.xlu0.b32.cont [5/16] %v32, 128
  %81 = vxpose.xlu0.b32.cont [6/16] %v33, 128
  %82 = vxpose.xlu0.b32.cont [7/16] %v34, 128
  %83 = vxpose.xlu0.b32.cont [8/16] %v35, 128
  %84 = vxpose.xlu0.b32.cont [9/16] %v36, 128
  %85 = vxpose.xlu0.b32.cont [10/16] %v37, 128
  %86 = vxpose.xlu0.b32.cont [11/16] %v38, 128
  %87 = vxpose.xlu0.b32.cont [12/16] %v39, 128
  %88 = vxpose.xlu0.b32.cont [13/16] %v40, 128
  %89 = vxpose.xlu0.b32.cont [14/16] %v41, 128
  %90 = vxpose.xlu0.b32.cont [15/16] %v42, 128
  %91 = vxpose.xlu0.b32.end [16/16] %v43, 128
  %v92 = vpop.trf.xlu0
  %v93 = vpop.trf.xlu0
  %v94 = vpop.trf.xlu0
  %v95 = vpop.trf.xlu0
  %v96 = vpop.trf.xlu0
  %v97 = vpop.trf.xlu0
  %v98 = vpop.trf.xlu0
  %v99 = vpop.trf.xlu0
  %v100 = vpop.trf.xlu0
  %v101 = vpop.trf.xlu0
  %v102 = vpop.trf.xlu0
  %v103 = vpop.trf.xlu0
  %v104 = vpop.trf.xlu0
  %v105 = vpop.trf.xlu0
  %v106 = vpop.trf.xlu0
  %v107 = vpop.trf.xlu0
  %108 = vxpose.xlu0.b32.start [1/16] %v44, 128
  %109 = vxpose.xlu0.b32.cont [2/16] %v45, 128
  %110 = vxpose.xlu0.b32.cont [3/16] %v46, 128
  %111 = vxpose.xlu0.b32.cont [4/16] %v47, 128
  %112 = vxpose.xlu0.b32.cont [5/16] %v48, 128
  %113 = vxpose.xlu0.b32.cont [6/16] %v49, 128
  %114 = vxpose.xlu0.b32.cont [7/16] %v50, 128
  %115 = vxpose.xlu0.b32.cont [8/16] %v51, 128
  %116 = vxpose.xlu0.b32.cont [9/16] %v52, 128
  %117 = vxpose.xlu0.b32.cont [10/16] %v53, 128
  %118 = vxpose.xlu0.b32.cont [11/16] %v54, 128
  %119 = vxpose.xlu0.b32.cont [12/16] %v55, 128
  %120 = vxpose.xlu0.b32.cont [13/16] %v56, 128
  %121 = vxpose.xlu0.b32.cont [14/16] %v57, 128
  %122 = vxpose.xlu0.b32.cont [15/16] %v58, 128
  %123 = vxpose.xlu0.b32.end [16/16] %v59, 128
  %v124 = vpop.trf.xlu0
  %v125 = vpop.trf.xlu0
  %v126 = vpop.trf.xlu0
  %v127 = vpop.trf.xlu0
  %v128 = vpop.trf.xlu0
  %v129 = vpop.trf.xlu0
  %v130 = vpop.trf.xlu0
  %v131 = vpop.trf.xlu0
  %v132 = vpop.trf.xlu0
  %v133 = vpop.trf.xlu0
  %v134 = vpop.trf.xlu0
  %v135 = vpop.trf.xlu0
  %v136 = vpop.trf.xlu0
  %v137 = vpop.trf.xlu0
  %v138 = vpop.trf.xlu0
  %v139 = vpop.trf.xlu0
  %140 = vxpose.xlu0.b32.start [1/16] %v60, 128
  %141 = vxpose.xlu0.b32.cont [2/16] %v61, 128
  %142 = vxpose.xlu0.b32.cont [3/16] %v62, 128
  %143 = vxpose.xlu0.b32.cont [4/16] %v63, 128
  %144 = vxpose.xlu0.b32.cont [5/16] %v64, 128
  %145 = vxpose.xlu0.b32.cont [6/16] %v65, 128
  %146 = vxpose.xlu0.b32.cont [7/16] %v66, 128
  %147 = vxpose.xlu0.b32.cont [8/16] %v67, 128
  %148 = vxpose.xlu0.b32.cont [9/16] %v68, 128
  %149 = vxpose.xlu0.b32.cont [10/16] %v69, 128
  %150 = vxpose.xlu0.b32.cont [11/16] %v70, 128
  %151 = vxpose.xlu0.b32.cont [12/16] %v71, 128
  %152 = vxpose.xlu0.b32.cont [13/16] %v72, 128
  %153 = vxpose.xlu0.b32.cont [14/16] %v73, 128
  %154 = vxpose.xlu0.b32.cont [15/16] %v74, 128
  %155 = vxpose.xlu0.b32.end [16/16] %v75, 128
  %v156 = vpop.trf.xlu0
  %v157 = vpop.trf.xlu0
  %v158 = vpop.trf.xlu0
  %v159 = vpop.trf.xlu0
  %v160 = vpop.trf.xlu0
  %v161 = vpop.trf.xlu0
  %v162 = vpop.trf.xlu0
  %v163 = vpop.trf.xlu0
  %v164 = vpop.trf.xlu0
  %v165 = vpop.trf.xlu0
  %v166 = vpop.trf.xlu0
  %v167 = vpop.trf.xlu0
  %v168 = vpop.trf.xlu0
  %v169 = vpop.trf.xlu0
  %v170 = vpop.trf.xlu0
  %v171 = vpop.trf.xlu0
  %v172 = vpack.c.bf16 %v93, %v92
  %v173 = vpack.c.bf16 %v125, %v124
  %v174 = vpack.c.bf16 %v157, %v156
  %v175 = vpack.c.bf16 %v95, %v94
  %v176 = vpack.c.bf16 %v127, %v126
  %v177 = vpack.c.bf16 %v159, %v158
  %v178 = vld [vmem:[%s1] sm:$0xf]
  %v179 = vld [vmem:[%s1 + $0x4] sm:$0xf]
  %v180 = vld [vmem:[%s1 + $0x8] sm:$0xf]
  %v181 = vld [vmem:[%s1 + $0xc] sm:$0xf]
  %v182 = vld [vmem:[%s1 + $0x10] sm:$0xf]
  %v183 = vld [vmem:[%s1 + $0x14] sm:$0xf]
  %v184 = vld [vmem:[%s1 + $0x18] sm:$0xf]
  %v185 = vld [vmem:[%s1 + $0x1c] sm:$0xf]
  %v186 = vld [vmem:[%s2] sm:$0xff]
  %v187 = vld [vmem:[%s2 + $0x8] sm:$0xff]
  %v188 = vld [vmem:[%s2 + $0x10] sm:$0xff]
  %v189 = vld [vmem:[%s2 + $0x18] sm:$0xff]
  %v190 = vld [vmem:[%s2 + $0x20] sm:$0xff]
  %v191 = vld [vmem:[%s2 + $0x28] sm:$0xff]
  %v192 = vld [vmem:[%s2 + $0x30] sm:$0xff]
  %v193 = vld [vmem:[%s2 + $0x38] sm:$0xff]
  %195 = vset.pattern.permute.xlu0 0
  %196 = vperm.xlu0 %195, %v186
  %v197 = vpop.permute.xlu0 %196
  %200 = vset.pattern.permute.xlu0 0
  %201 = vperm.xlu0 %200, %v187
  %v202 = vpop.permute.xlu0 %201
  %205 = vset.pattern.permute.xlu0 0
  %206 = vperm.xlu0 %205, %v188
  %v207 = vpop.permute.xlu0 %206
  %210 = vset.pattern.permute.xlu0 0
  %211 = vperm.xlu0 %210, %v189
  %v212 = vpop.permute.xlu0 %211
  %215 = vset.pattern.permute.xlu0 0
  %216 = vperm.xlu0 %215, %v190
  %v217 = vpop.permute.xlu0 %216
  %220 = vset.pattern.permute.xlu0 0
  %221 = vperm.xlu0 %220, %v191
  %v222 = vpop.permute.xlu0 %221
  %225 = vset.pattern.permute.xlu0 0
  %226 = vperm.xlu0 %225, %v192
  %v227 = vpop.permute.xlu0 %226
  %230 = vset.pattern.permute.xlu0 0
  %231 = vperm.xlu0 %230, %v193
  %v232 = vpop.permute.xlu0 %231
  %v242 = vunpack.c.l.b16 %v178
  %v243 = vunpack.c.l.b16 %v179
  %v244 = vunpack.c.l.b16 %v180
  %v245 = vunpack.c.l.b16 %v181
  %v246 = vunpack.c.l.b16 %v182
  %v247 = vunpack.c.l.b16 %v183
  %v248 = vunpack.c.l.b16 %v184
  %v249 = vunpack.c.l.b16 %v185
  %v250 = vpack.c.b16 %v243, %v242
  %v251 = vpack.c.b16 %v245, %v244
  %v252 = vpack.c.b16 %v247, %v246
  %v253 = vpack.c.b16 %v249, %v248
  %vm254 = vcmask 261120
  %v256 = vsel %vm254, %v250, 0
  %v259 = vsel %vm254, %v251, 0
  %v262 = vsel %vm254, %v252, 0
  %v265 = vsel %vm254, %v253, 0
  %267 = vmatprep.subr.bf16.mxu0 %v173
  %268 = vmatpush1.bf16.msra.mxu0 %v172
  %269 = vmatprep.subr.bf16.mxu0 %v176
  %270 = vmatpush1.bf16.msra.mxu0 %v175
  %271 = vmatprep.subr.bf16.mxu0 0
  %272 = vmatpush1.bf16.msra.mxu0 0
  %273 = vmatprep.subr.bf16.mxu0 0
  %274 = vmatpush1.bf16.msra.mxu0 0
  %275 = vmatprep.subr.bf16.mxu0 0
  %276 = vmatpush1.bf16.msra.mxu0 0
  %277 = vmatprep.subr.bf16.mxu0 0
  %278 = vmatpush1.bf16.msra.mxu0 0
  %279 = vmatprep.subr.bf16.mxu0 0
  %280 = vmatpush1.bf16.msra.mxu0 0
  %281 = vmatprep.subr.bf16.mxu0 0
  %282 = vmatpush1.bf16.msra.mxu0 0
  %283 = vmatprep.subr.bf16.mxu0 0
  %284 = vmatpush1.bf16.msra.mxu0 0
  %285 = vmatprep.subr.bf16.mxu0 0
  %286 = vmatpush1.bf16.msra.mxu0 0
  %287 = vmatprep.subr.bf16.mxu0 0
  %288 = vmatpush1.bf16.msra.mxu0 0
  %289 = vmatprep.subr.bf16.mxu0 0
  %290 = vmatpush1.bf16.msra.mxu0 0
  %291 = vmatprep.subr.bf16.mxu0 0
  %292 = vmatpush1.bf16.msra.mxu0 0
  %293 = vmatprep.subr.bf16.mxu0 0
  %294 = vmatpush1.bf16.msra.mxu0 0
  %295 = vmatprep.subr.bf16.mxu0 0
  %296 = vmatpush1.bf16.msra.mxu0 0
  %297 = vmatprep.subr.bf16.mxu0 0
  %298 = vmatpush1.bf16.msra.mxu0 0
  %299 = vmatprep.mubr.bf16.mxu0 0
  %300 = vmatmul.mubr.bf16.gmra.mrb[0].mxu0 %v256
  %v301 = vpop.f32.mrb[0].mxu0
  %v302 = vadd.f32 %v197, %v301
  %v303 = vpop.f32.mrb[0].mxu0
  %v304 = vadd.f32 %v197, %v303
  %v305 = vpop.f32.mrb[0].mxu0
  %v306 = vadd.f32 %v202, %v305
  %v307 = vpop.f32.mrb[0].mxu0
  %v308 = vadd.f32 %v202, %v307
  %309 = vmatprep.mubr.bf16.mxu0 0
  %310 = vmatmul.mubr.bf16.gmra.mrb[0].mxu0 %v259
  %v311 = vpop.f32.mrb[0].mxu0
  %v312 = vadd.f32 %v207, %v311
  %v313 = vpop.f32.mrb[0].mxu0
  %v314 = vadd.f32 %v207, %v313
  %v315 = vpop.f32.mrb[0].mxu0
  %v316 = vadd.f32 %v212, %v315
  %v317 = vpop.f32.mrb[0].mxu0
  %v318 = vadd.f32 %v212, %v317
  %319 = vmatprep.mubr.bf16.mxu0 0
  %320 = vmatmul.mubr.bf16.gmra.mrb[0].mxu0 %v262
  %v321 = vpop.f32.mrb[0].mxu0
  %v322 = vadd.f32 %v217, %v321
  %v323 = vpop.f32.mrb[0].mxu0
  %v324 = vadd.f32 %v217, %v323
  %v325 = vpop.f32.mrb[0].mxu0
  %v326 = vadd.f32 %v222, %v325
  %v327 = vpop.f32.mrb[0].mxu0
  %v328 = vadd.f32 %v222, %v327
  %329 = vmatprep.mubr.bf16.mxu0 0
  %330 = vmatmul.mubr.bf16.gmra.mrb[0].mxu0 %v265
  %v331 = vpop.f32.mrb[0].mxu0
  %v332 = vadd.f32 %v227, %v331
  %v333 = vpop.f32.mrb[0].mxu0
  %v334 = vadd.f32 %v227, %v333
  %v335 = vpop.f32.mrb[0].mxu0
  %v336 = vadd.f32 %v232, %v335
  %v337 = vpop.f32.mrb[0].mxu0
  %v338 = vadd.f32 %v232, %v337
  %339 = vdwg.mxu0
  %340 = vmatprep.subr.bf16.mxu0 0
  %341 = vmatpush1.bf16.msra.mxu0 %v174
  %342 = vmatprep.subr.bf16.mxu0 0
  %343 = vmatpush1.bf16.msra.mxu0 %v177
  %344 = vmatprep.subr.bf16.mxu0 0
  %345 = vmatpush1.bf16.msra.mxu0 0
  %346 = vmatprep.subr.bf16.mxu0 0
  %347 = vmatpush1.bf16.msra.mxu0 0
  %348 = vmatprep.subr.bf16.mxu0 0
  %349 = vmatpush1.bf16.msra.mxu0 0
  %350 = vmatprep.subr.bf16.mxu0 0
  %351 = vmatpush1.bf16.msra.mxu0 0
  %352 = vmatprep.subr.bf16.mxu0 0
  %353 = vmatpush1.bf16.msra.mxu0 0
  %354 = vmatprep.subr.bf16.mxu0 0
  %355 = vmatpush1.bf16.msra.mxu0 0
  %356 = vmatprep.subr.bf16.mxu0 0
  %357 = vmatpush1.bf16.msra.mxu0 0
  %358 = vmatprep.subr.bf16.mxu0 0
  %359 = vmatpush1.bf16.msra.mxu0 0
  %360 = vmatprep.subr.bf16.mxu0 0
  %361 = vmatpush1.bf16.msra.mxu0 0
  %362 = vmatprep.subr.bf16.mxu0 0
  %363 = vmatpush1.bf16.msra.mxu0 0
  %364 = vmatprep.subr.bf16.mxu0 0
  %365 = vmatpush1.bf16.msra.mxu0 0
  %366 = vmatprep.subr.bf16.mxu0 0
  %367 = vmatpush1.bf16.msra.mxu0 0
  %368 = vmatprep.subr.bf16.mxu0 0
  %369 = vmatpush1.bf16.msra.mxu0 0
  %370 = vmatprep.subr.bf16.mxu0 0
  %371 = vmatpush1.bf16.msra.mxu0 0
  %372 = vmatprep.mubr.bf16.mxu0 0
  %373 = vmatmul.mubr.bf16.gmra.mrb[0].mxu0 %v256
  %v374 = vpop.f32.mrb[0].mxu0
  %v375 = vadd.f32 %v197, %v374
  %v376 = vpop.f32.mrb[0].mxu0
  %v377 = vpop.f32.mrb[0].mxu0
  %v378 = vadd.f32 %v202, %v377
  %v379 = vpop.f32.mrb[0].mxu0
  %380 = vmatprep.mubr.bf16.mxu0 0
  %381 = vmatmul.mubr.bf16.gmra.mrb[0].mxu0 %v259
  %v382 = vpop.f32.mrb[0].mxu0
  %v383 = vadd.f32 %v207, %v382
  %v384 = vpop.f32.mrb[0].mxu0
  %v385 = vpop.f32.mrb[0].mxu0
  %v386 = vadd.f32 %v212, %v385
  %v387 = vpop.f32.mrb[0].mxu0
  %388 = vmatprep.mubr.bf16.mxu0 0
  %389 = vmatmul.mubr.bf16.gmra.mrb[0].mxu0 %v262
  %v390 = vpop.f32.mrb[0].mxu0
  %v391 = vadd.f32 %v217, %v390
  %v392 = vpop.f32.mrb[0].mxu0
  %v393 = vpop.f32.mrb[0].mxu0
  %v394 = vadd.f32 %v222, %v393
  %v395 = vpop.f32.mrb[0].mxu0
  %396 = vmatprep.mubr.bf16.mxu0 0
  %397 = vmatmul.mubr.bf16.gmra.mrb[0].mxu0 %v265
  %v398 = vpop.f32.mrb[0].mxu0
  %v399 = vadd.f32 %v227, %v398
  %v400 = vpop.f32.mrb[0].mxu0
  %v401 = vpop.f32.mrb[0].mxu0
  %v402 = vadd.f32 %v232, %v401
  %v403 = vpop.f32.mrb[0].mxu0
  %404 = vdwg.mxu0
  %v405 = vmax.f32 %v302, 0.0
  %v406 = vmax.f32 %v304, 0.0
  %v407 = vmax.f32 %v375, 0.0
  %v408 = vmax.f32 %v306, 0.0
  %v409 = vmax.f32 %v308, 0.0
  %v410 = vmax.f32 %v378, 0.0
  %v411 = vmax.f32 %v312, 0.0
  %v412 = vmax.f32 %v314, 0.0
  %v413 = vmax.f32 %v383, 0.0
  %v414 = vmax.f32 %v316, 0.0
  %v415 = vmax.f32 %v318, 0.0
  %v416 = vmax.f32 %v386, 0.0
  %v417 = vmax.f32 %v322, 0.0
  %v418 = vmax.f32 %v324, 0.0
  %v419 = vmax.f32 %v391, 0.0
  %v420 = vmax.f32 %v326, 0.0
  %v421 = vmax.f32 %v328, 0.0
  %v422 = vmax.f32 %v394, 0.0
  %v423 = vmax.f32 %v332, 0.0
  %v424 = vmax.f32 %v334, 0.0
  %v425 = vmax.f32 %v399, 0.0
  %v426 = vmax.f32 %v336, 0.0
  %v427 = vmax.f32 %v338, 0.0
  %v428 = vmax.f32 %v402, 0.0
  %v429 = vld [vmem:[%s3] sm:$0xf]
  %v430 = vld [vmem:[%s3 + $0x4] sm:$0xf]
  %v431 = vld [vmem:[%s3 + $0x8] sm:$0xf]
  %v432 = vld [vmem:[%s3 + $0xc] sm:$0xf]
  %v433 = vld [vmem:[%s3 + $0x10] sm:$0xf]
  %v434 = vld [vmem:[%s3 + $0x14] sm:$0xf]
  %v435 = vld [vmem:[%s3 + $0x18] sm:$0xf]
  %v436 = vld [vmem:[%s3 + $0x1c] sm:$0xf]
  %v437 = vpack.c.bf16 %v408, %v405
  %v438 = vpack.c.bf16 %v409, %v406
  %v439 = vpack.c.bf16 %v410, %v407
  %v440 = vpack.c.bf16 %v414, %v411
  %v441 = vpack.c.bf16 %v415, %v412
  %v442 = vpack.c.bf16 %v416, %v413
  %v443 = vpack.c.bf16 %v420, %v417
  %v444 = vpack.c.bf16 %v421, %v418
  %v445 = vpack.c.bf16 %v422, %v419
  %v446 = vpack.c.bf16 %v426, %v423
  %v447 = vpack.c.bf16 %v427, %v424
  %v448 = vpack.c.bf16 %v428, %v425
  %v449 = vld [vmem:[%s4] sm:$0xff]
  %v450 = vld [vmem:[%s4 + $0x8] sm:$0xff]
  %v451 = vld [vmem:[%s4 + $0x10] sm:$0xff]
  %v452 = vld [vmem:[%s4 + $0x18] sm:$0xff]
  %v453 = vld [vmem:[%s4 + $0x20] sm:$0xff]
  %v454 = vld [vmem:[%s4 + $0x28] sm:$0xff]
  %v455 = vld [vmem:[%s4 + $0x30] sm:$0xff]
  %v456 = vld [vmem:[%s4 + $0x38] sm:$0xff]
  %458 = vset.pattern.permute.xlu0 0
  %459 = vperm.xlu0 %458, %v449
  %v460 = vpop.permute.xlu0 %459
  %463 = vset.pattern.permute.xlu0 0
  %464 = vperm.xlu0 %463, %v450
  %v465 = vpop.permute.xlu0 %464
  %468 = vset.pattern.permute.xlu0 0
  %469 = vperm.xlu0 %468, %v451
  %v470 = vpop.permute.xlu0 %469
  %473 = vset.pattern.permute.xlu0 0
  %474 = vperm.xlu0 %473, %v452
  %v475 = vpop.permute.xlu0 %474
  %478 = vset.pattern.permute.xlu0 0
  %479 = vperm.xlu0 %478, %v453
  %v480 = vpop.permute.xlu0 %479
  %483 = vset.pattern.permute.xlu0 0
  %484 = vperm.xlu0 %483, %v454
  %v485 = vpop.permute.xlu0 %484
  %488 = vset.pattern.permute.xlu0 0
  %489 = vperm.xlu0 %488, %v455
  %v490 = vpop.permute.xlu0 %489
  %493 = vset.pattern.permute.xlu0 0
  %494 = vperm.xlu0 %493, %v456
  %v495 = vpop.permute.xlu0 %494
  %v505 = vunpack.c.l.b16 %v429
  %v506 = vunpack.c.l.b16 %v430
  %v507 = vunpack.c.l.b16 %v431
  %v508 = vunpack.c.l.b16 %v432
  %v509 = vunpack.c.l.b16 %v433
  %v510 = vunpack.c.l.b16 %v434
  %v511 = vunpack.c.l.b16 %v435
  %v512 = vunpack.c.l.b16 %v436
  %v513 = vpack.c.b16 %v506, %v505
  %v514 = vpack.c.b16 %v508, %v507
  %v515 = vpack.c.b16 %v510, %v509
  %v516 = vpack.c.b16 %v512, %v511
  %vm517 = vcmask 523264
  %v519 = vsel %vm517, %v513, 0
  %v522 = vsel %vm517, %v514, 0
  %v525 = vsel %vm517, %v515, 0
  %v528 = vsel %vm517, %v516, 0
  %530 = vmatprep.subr.bf16.mxu0 %v438
  %531 = vmatpush1.bf16.msra.mxu0 %v437
  %532 = vmatprep.subr.bf16.mxu0 %v441
  %533 = vmatpush1.bf16.msra.mxu0 %v440
  %534 = vmatprep.subr.bf16.mxu0 %v444
  %535 = vmatpush1.bf16.msra.mxu0 %v443
  %536 = vmatprep.subr.bf16.mxu0 %v447
  %537 = vmatpush1.bf16.msra.mxu0 %v446
  %538 = vmatprep.subr.bf16.mxu0 0
  %539 = vmatpush1.bf16.msra.mxu0 0
  %540 = vmatprep.subr.bf16.mxu0 0
  %541 = vmatpush1.bf16.msra.mxu0 0
  %542 = vmatprep.subr.bf16.mxu0 0
  %543 = vmatpush1.bf16.msra.mxu0 0
  %544 = vmatprep.subr.bf16.mxu0 0
  %545 = vmatpush1.bf16.msra.mxu0 0
  %546 = vmatprep.subr.bf16.mxu0 0
  %547 = vmatpush1.bf16.msra.mxu0 0
  %548 = vmatprep.subr.bf16.mxu0 0
  %549 = vmatpush1.bf16.msra.mxu0 0
  %550 = vmatprep.subr.bf16.mxu0 0
  %551 = vmatpush1.bf16.msra.mxu0 0
  %552 = vmatprep.subr.bf16.mxu0 0
  %553 = vmatpush1.bf16.msra.mxu0 0
  %554 = vmatprep.subr.bf16.mxu0 0
  %555 = vmatpush1.bf16.msra.mxu0 0
  %556 = vmatprep.subr.bf16.mxu0 0
  %557 = vmatpush1.bf16.msra.mxu0 0
  %558 = vmatprep.subr.bf16.mxu0 0
  %559 = vmatpush1.bf16.msra.mxu0 0
  %560 = vmatprep.subr.bf16.mxu0 0
  %561 = vmatpush1.bf16.msra.mxu0 0
  %562 = vmatprep.mubr.bf16.mxu0 0
  %563 = vmatmul.mubr.bf16.gmra.mrb[0].mxu0 %v519
  %v564 = vpop.f32.mrb[0].mxu0
  %v565 = vadd.f32 %v460, %v564
  %v566 = vpop.f32.mrb[0].mxu0
  %v567 = vadd.f32 %v460, %v566
  %v568 = vpop.f32.mrb[0].mxu0
  %v569 = vadd.f32 %v465, %v568
  %v570 = vpop.f32.mrb[0].mxu0
  %v571 = vadd.f32 %v465, %v570
  %572 = vmatprep.mubr.bf16.mxu0 0
  %573 = vmatmul.mubr.bf16.gmra.mrb[0].mxu0 %v522
  %v574 = vpop.f32.mrb[0].mxu0
  %v575 = vadd.f32 %v470, %v574
  %v576 = vpop.f32.mrb[0].mxu0
  %v577 = vadd.f32 %v470, %v576
  %v578 = vpop.f32.mrb[0].mxu0
  %v579 = vadd.f32 %v475, %v578
  %v580 = vpop.f32.mrb[0].mxu0
  %v581 = vadd.f32 %v475, %v580
  %582 = vmatprep.mubr.bf16.mxu0 0
  %583 = vmatmul.mubr.bf16.gmra.mrb[0].mxu0 %v525
  %v584 = vpop.f32.mrb[0].mxu0
  %v585 = vadd.f32 %v480, %v584
  %v586 = vpop.f32.mrb[0].mxu0
  %v587 = vadd.f32 %v480, %v586
  %v588 = vpop.f32.mrb[0].mxu0
  %v589 = vadd.f32 %v485, %v588
  %v590 = vpop.f32.mrb[0].mxu0
  %v591 = vadd.f32 %v485, %v590
  %592 = vmatprep.mubr.bf16.mxu0 0
  %593 = vmatmul.mubr.bf16.gmra.mrb[0].mxu0 %v528
  %v594 = vpop.f32.mrb[0].mxu0
  %v595 = vadd.f32 %v490, %v594
  %v596 = vpop.f32.mrb[0].mxu0
  %v597 = vadd.f32 %v490, %v596
  %v598 = vpop.f32.mrb[0].mxu0
  %v599 = vadd.f32 %v495, %v598
  %v600 = vpop.f32.mrb[0].mxu0
  %v601 = vadd.f32 %v495, %v600
  %602 = vdwg.mxu0
  %603 = vmatprep.subr.bf16.mxu0 0
  %604 = vmatpush1.bf16.msra.mxu0 %v439
  %605 = vmatprep.subr.bf16.mxu0 0
  %606 = vmatpush1.bf16.msra.mxu0 %v442
  %607 = vmatprep.subr.bf16.mxu0 0
  %608 = vmatpush1.bf16.msra.mxu0 %v445
  %609 = vmatprep.subr.bf16.mxu0 0
  %610 = vmatpush1.bf16.msra.mxu0 %v448
  %611 = vmatprep.subr.bf16.mxu0 0
  %612 = vmatpush1.bf16.msra.mxu0 0
  %613 = vmatprep.subr.bf16.mxu0 0
  %614 = vmatpush1.bf16.msra.mxu0 0
  %615 = vmatprep.subr.bf16.mxu0 0
  %616 = vmatpush1.bf16.msra.mxu0 0
  %617 = vmatprep.subr.bf16.mxu0 0
  %618 = vmatpush1.bf16.msra.mxu0 0
  %619 = vmatprep.subr.bf16.mxu0 0
  %620 = vmatpush1.bf16.msra.mxu0 0
  %621 = vmatprep.subr.bf16.mxu0 0
  %622 = vmatpush1.bf16.msra.mxu0 0
  %623 = vmatprep.subr.bf16.mxu0 0
  %624 = vmatpush1.bf16.msra.mxu0 0
  %625 = vmatprep.subr.bf16.mxu0 0
  %626 = vmatpush1.bf16.msra.mxu0 0
  %627 = vmatprep.subr.bf16.mxu0 0
  %628 = vmatpush1.bf16.msra.mxu0 0
  %629 = vmatprep.subr.bf16.mxu0 0
  %630 = vmatpush1.bf16.msra.mxu0 0
  %631 = vmatprep.subr.bf16.mxu0 0
  %632 = vmatpush1.bf16.msra.mxu0 0
  %633 = vmatprep.subr.bf16.mxu0 0
  %634 = vmatpush1.bf16.msra.mxu0 0
  %635 = vmatprep.mubr.bf16.mxu0 0
  %636 = vmatmul.mubr.bf16.gmra.mrb[0].mxu0 %v519
  %v637 = vpop.f32.mrb[0].mxu0
  %v638 = vadd.f32 %v460, %v637
  %v639 = vpop.f32.mrb[0].mxu0
  %v640 = vpop.f32.mrb[0].mxu0
  %v641 = vadd.f32 %v465, %v640
  %v642 = vpop.f32.mrb[0].mxu0
  %643 = vmatprep.mubr.bf16.mxu0 0
  %644 = vmatmul.mubr.bf16.gmra.mrb[0].mxu0 %v522
  %v645 = vpop.f32.mrb[0].mxu0
  %v646 = vadd.f32 %v470, %v645
  %v647 = vpop.f32.mrb[0].mxu0
  %v648 = vpop.f32.mrb[0].mxu0
  %v649 = vadd.f32 %v475, %v648
  %v650 = vpop.f32.mrb[0].mxu0
  %651 = vmatprep.mubr.bf16.mxu0 0
  %652 = vmatmul.mubr.bf16.gmra.mrb[0].mxu0 %v525
  %v653 = vpop.f32.mrb[0].mxu0
  %v654 = vadd.f32 %v480, %v653
  %v655 = vpop.f32.mrb[0].mxu0
  %v656 = vpop.f32.mrb[0].mxu0
  %v657 = vadd.f32 %v485, %v656
  %v658 = vpop.f32.mrb[0].mxu0
  %659 = vmatprep.mubr.bf16.mxu0 0
  %660 = vmatmul.mubr.bf16.gmra.mrb[0].mxu0 %v528
  %v661 = vpop.f32.mrb[0].mxu0
  %v662 = vadd.f32 %v490, %v661
  %v663 = vpop.f32.mrb[0].mxu0
  %v664 = vpop.f32.mrb[0].mxu0
  %v665 = vadd.f32 %v495, %v664
  %v666 = vpop.f32.mrb[0].mxu0
  %667 = vdwg.mxu0
  %v668 = vmax.f32 %v565, 0.0
  %v669 = vmax.f32 %v567, 0.0
  %v670 = vmax.f32 %v638, 0.0
  %v671 = vmax.f32 %v569, 0.0
  %v672 = vmax.f32 %v571, 0.0
  %v673 = vmax.f32 %v641, 0.0
  %v674 = vmax.f32 %v575, 0.0
  %v675 = vmax.f32 %v577, 0.0
  %v676 = vmax.f32 %v646, 0.0
  %v677 = vmax.f32 %v579, 0.0
  %v678 = vmax.f32 %v581, 0.0
  %v679 = vmax.f32 %v649, 0.0
  %v680 = vmax.f32 %v585, 0.0
  %v681 = vmax.f32 %v587, 0.0
  %v682 = vmax.f32 %v654, 0.0
  %v683 = vmax.f32 %v589, 0.0
  %v684 = vmax.f32 %v591, 0.0
  %v685 = vmax.f32 %v657, 0.0
  %v686 = vmax.f32 %v595, 0.0
  %v687 = vmax.f32 %v597, 0.0
  %v688 = vmax.f32 %v662, 0.0
  %v689 = vmax.f32 %v599, 0.0
  %v690 = vmax.f32 %v601, 0.0
  %v691 = vmax.f32 %v665, 0.0
  %v692 = vld [vmem:[%s5] sm:$0xff]
  %v693 = vld [vmem:[%s5 + $0x8] sm:$0xff]
  %v694 = vld [vmem:[%s5 + $0x10] sm:$0xff]
  %v695 = vld [vmem:[%s5 + $0x18] sm:$0xff]
  %v696 = vld [vmem:[%s5 + $0x20] sm:$0xff]
  %v697 = vld [vmem:[%s5 + $0x28] sm:$0xff]
  %v698 = vld [vmem:[%s5 + $0x30] sm:$0xff]
  %v699 = vld [vmem:[%s5 + $0x38] sm:$0xff]
  %701 = vset.pattern.permute.xlu0 0
  %702 = vperm.xlu0 %701, %v692
  %v703 = vpop.permute.xlu0 %702
  %706 = vset.pattern.permute.xlu0 0
  %707 = vperm.xlu0 %706, %v693
  %v708 = vpop.permute.xlu0 %707
  %711 = vset.pattern.permute.xlu0 0
  %712 = vperm.xlu0 %711, %v694
  %v713 = vpop.permute.xlu0 %712
  %716 = vset.pattern.permute.xlu0 0
  %717 = vperm.xlu0 %716, %v695
  %v718 = vpop.permute.xlu0 %717
  %721 = vset.pattern.permute.xlu0 0
  %722 = vperm.xlu0 %721, %v696
  %v723 = vpop.permute.xlu0 %722
  %726 = vset.pattern.permute.xlu0 0
  %727 = vperm.xlu0 %726, %v697
  %v728 = vpop.permute.xlu0 %727
  %731 = vset.pattern.permute.xlu0 0
  %732 = vperm.xlu0 %731, %v698
  %v733 = vpop.permute.xlu0 %732
  %736 = vset.pattern.permute.xlu0 0
  %737 = vperm.xlu0 %736, %v699
  %v738 = vpop.permute.xlu0 %737
  %v740 = vmul.f32 %v668, %v703
  %v741 = vmul.f32 %v669, %v703
  %v742 = vmul.f32 %v670, %v703
  %v743 = vmul.f32 %v671, %v708
  %v744 = vmul.f32 %v672, %v708
  %v745 = vmul.f32 %v673, %v708
  %v746 = vmul.f32 %v674, %v713
  %v747 = vmul.f32 %v675, %v713
  %v748 = vmul.f32 %v676, %v713
  %v749 = vmul.f32 %v677, %v718
  %v750 = vmul.f32 %v678, %v718
  %v751 = vmul.f32 %v679, %v718
  %v752 = vmul.f32 %v680, %v723
  %v753 = vmul.f32 %v681, %v723
  %v754 = vmul.f32 %v682, %v723
  %v755 = vmul.f32 %v683, %v728
  %v756 = vmul.f32 %v684, %v728
  %v757 = vmul.f32 %v685, %v728
  %v758 = vmul.f32 %v686, %v733
  %v759 = vmul.f32 %v687, %v733
  %v760 = vmul.f32 %v688, %v733
  %v761 = vmul.f32 %v689, %v738
  %v762 = vmul.f32 %v690, %v738
  %v763 = vmul.f32 %v691, %v738
  %v764 = vadd.f32 %v740, %v743
  %v765 = vadd.f32 %v764, %v746
  %v766 = vadd.f32 %v765, %v749
  %v767 = vadd.f32 %v766, %v752
  %v768 = vadd.f32 %v767, %v755
  %v769 = vadd.f32 %v768, %v758
  %v770 = vadd.f32 %v769, %v761
  %v771 = vrot.slane %v770, 4
  %v772 = vadd.f32 %v770, %v771
  %v773 = vrot.slane %v772, 2
  %v774 = vadd.f32 %v772, %v773
  %v775 = vrot.slane %v774, 1
  %v776 = vadd.f32 %v774, %v775
  %v777 = vadd.f32 %v741, %v744
  %v778 = vadd.f32 %v777, %v747
  %v779 = vadd.f32 %v778, %v750
  %v780 = vadd.f32 %v779, %v753
  %v781 = vadd.f32 %v780, %v756
  %v782 = vadd.f32 %v781, %v759
  %v783 = vadd.f32 %v782, %v762
  %v784 = vrot.slane %v783, 4
  %v785 = vadd.f32 %v783, %v784
  %v786 = vrot.slane %v785, 2
  %v787 = vadd.f32 %v785, %v786
  %v788 = vrot.slane %v787, 1
  %v789 = vadd.f32 %v787, %v788
  %v790 = vadd.f32 %v742, %v745
  %v791 = vadd.f32 %v790, %v748
  %v792 = vadd.f32 %v791, %v751
  %v793 = vadd.f32 %v792, %v754
  %v794 = vadd.f32 %v793, %v757
  %v795 = vadd.f32 %v794, %v760
  %v796 = vadd.f32 %v795, %v763
  %v797 = vrot.slane %v796, 4
  %v798 = vadd.f32 %v796, %v797
  %v799 = vrot.slane %v798, 2
  %v800 = vadd.f32 %v798, %v799
  %v801 = vrot.slane %v800, 1
  %v802 = vadd.f32 %v800, %v801
  %s803 = sld [smem:[#allocation2]]
  %v804 = vstv %s803
  %v805 = vadd.f32 %v776, %v804
  %v806 = vadd.f32 %v789, %v804
  %v807 = vadd.f32 %v802, %v804
  %v808 = vtanh.pop %v805
  %v809 = vtanh.pop %v806
  %v810 = vtanh.pop %v807
  %v814 = vcombine.low %v808, %v809
  %v816 = vunpack.c.l.s4 1966171168
  %v817 = vunpack.c.0.s8 %v816
  %v818 = vlaneseq
  %v819 = vshrl.u32 %v818, 7
  %v820 = vsub.s32 %v817, %v819
  %v821 = vrot.slane %v814, %v820
  %v823 = vunpack.c.l.s4 1966171168
  %v824 = vunpack.c.0.s8 %v823
  %v825 = vlaneseq
  %v826 = vshrl.u32 %v825, 7
  %v827 = vsub.s32 %v824, %v826
  %v828 = vrot.slane %v810, %v827
  %v829 = vcombine.low %v821, %v828
  %v831 = vunpack.c.l.s4 1966171168
  %v832 = vunpack.c.0.s8 %v831
  %v833 = vlaneseq
  %v834 = vshrl.u32 %v833, 7
  %v835 = vsub.s32 %v832, %v834
  %v836 = vrot.slane %v829, %v835
  %v838 = vlaneseq
  %vm839 = vcmp.ge.s32.totalorder %v838, 0
  %vm840 = vcmp.lt.s32.totalorder %v838, 384
  %vm841 = vmand %vm839, %vm840
  %842 = vst.msk [vmem:[%s7] sm:$0x7] %vm841, %v836
  // Predicated region
  $region30: #{_forward_impl.1} parent=0 // pred_check
    _
  $region31: #{_forward_impl.1} parent=0 // pred_check_branch
    %844 = sbr.rel (0) target = $region33
  $region32: #{_forward_impl.1} parent=0 // pred_region
    _
  $region33: #{_forward_impl.1} parent=0 // pred_fallthru
    _
  // Predicated region
  $region34: #{_forward_impl.1} parent=0 // pred_check
    _
  $region35: #{_forward_impl.1} parent=0 // pred_check_branch
    %846 = sbr.rel (0) target = $region37
  $region36: #{_forward_impl.1} parent=0 // pred_region
    _
  $region37: #{_forward_impl.1} parent=0 // pred_fallthru
    _

</llo_original>
